<compile_context>
chip_gen: v7x
topology: tpu7x:2x2x1
jax: 0.10.0
libtpu: 0.0.40
codegen_flags: <defaults>
</compile_context>

<pallas_src>
import math
from functools import partial

import jax
import jax.numpy as jnp
from jax.experimental import pallas as pl
from jax.experimental.pallas import tpu as pltpu


def _patch_embed_gemm_kernel(p_ref, w_ref, b_ref, o_ref):
    # p_ref: (tm, K)   rows of flattened patches
    # w_ref: (K, tn)   projection weight (column tile)
    # b_ref: (1, tn)   bias (column tile)
    # o_ref: (tm, tn)  output tile
    acc = jnp.dot(p_ref[...], w_ref[...], preferred_element_type=jnp.float32)
    acc = acc + b_ref[...].astype(jnp.float32)      # (1, tn) broadcasts over rows
    o_ref[...] = acc.astype(o_ref.dtype)


def _round_up(x, m):
    return (x + m - 1) // m * m


def _pick_tiles(m, k, e_pad, itemsize=4, budget_bytes=24 << 20):
    """Largest lane-aligned tiles that fit a conservative VMEM budget
    (inputs + output, double-buffered)."""
    if e_pad % 512 == 0:
        tn = 512
    elif e_pad % 256 == 0:
        tn = 256
    else:
        tn = 128
    tm = 512
    while tm > 8:
        vmem = 2 * (tm * k + k * tn + tn + tm * tn) * itemsize
        if vmem <= budget_bytes:
            break
        tm //= 2
    tm = max(8, min(tm, _round_up(m, 8)))
    tm = _round_up(tm, 8)
    return tm, tn


@partial(jax.jit, static_argnames=("patch_size", "sample_embed_dim", "flatten",
                                   "dynamic_img_pad", "scale", "super_embed_dim"))
def super_patch_embed(x, weight, bias, *, patch_size, sample_embed_dim=None,
                      flatten=True, dynamic_img_pad=True, scale=False,
                      super_embed_dim=None):
    """Forward of Super_PatchEmbed.

    x:      (B, C, H, W)
    weight: (E_super, C, P, P)  (nn.Conv2d weight); sliced to sample_embed_dim
    bias:   (E_super,)
    Returns (B, N, E) when flatten=True, else (B, E, Gh, Gw).
    """
    if isinstance(patch_size, int):
        ph, pw = patch_size, patch_size
    else:
        ph, pw = patch_size

    e_super = weight.shape[0]
    e = sample_embed_dim if sample_embed_dim is not None else e_super
    # set_sample_config slicing (glue, plain JAX)
    w_s = weight[:e]                         # (E, C, ph, pw)
    b_s = bias[:e]                           # (E,)

    b_sz, c, h, w = x.shape

    if dynamic_img_pad:
        pad_h = (-h) % ph
        pad_w = (-w) % pw
        if pad_h or pad_w:
            x = jnp.pad(x, ((0, 0), (0, 0), (0, pad_h), (0, pad_w)))
            h += pad_h
            w += pad_w
    else:
        assert h % ph == 0 and w % pw == 0

    gh, gw = h // ph, w // pw
    n = gh * gw
    k = c * ph * pw

    # im2col (layout plumbing; fused into one copy under jit):
    # (B, C, Gh, ph, Gw, pw) -> (B, Gh, Gw, C, ph, pw) -> (B*N, K)
    patches = x.reshape(b_sz, c, gh, ph, gw, pw)
    patches = patches.transpose(0, 2, 4, 1, 3, 5).reshape(b_sz * n, k)

    w_mat = w_s.reshape(e, k).T              # (K, E)  -- matches (C, ph, pw) order
    b_row = b_s.reshape(1, e)                # (1, E)

    # Lane-dense output: pad E up to a multiple of 128 (zero weight/bias cols,
    # sliced off afterwards).  Fold B*N into a single row axis.
    m = b_sz * n
    e_pad = _round_up(max(e, 1), 128)
    tm, tn = _pick_tiles(m, k, e_pad, itemsize=jnp.dtype(x.dtype).itemsize)
    m_pad = _round_up(m, tm)

    if m_pad != m:
        patches = jnp.pad(patches, ((0, m_pad - m), (0, 0)))
    if e_pad != e:
        w_mat = jnp.pad(w_mat, ((0, 0), (0, e_pad - e)))
        b_row = jnp.pad(b_row, ((0, 0), (0, e_pad - e)))

    out = pl.pallas_call(
        _patch_embed_gemm_kernel,
        out_shape=jax.ShapeDtypeStruct((m_pad, e_pad), x.dtype),
        grid=(m_pad // tm, e_pad // tn),
        in_specs=[
            pl.BlockSpec((tm, k), lambda i, j: (i, 0)),   # patch rows (full K)
            pl.BlockSpec((k, tn), lambda i, j: (0, j)),   # weight column tile
            pl.BlockSpec((1, tn), lambda i, j: (0, j)),   # bias column tile
        ],
        out_specs=pl.BlockSpec((tm, tn), lambda i, j: (i, j)),
        compiler_params=pltpu.CompilerParams(
            dimension_semantics=("parallel", "parallel")),
    )(patches, w_mat, b_row)

    out = out[:m, :e].reshape(b_sz, n, e)    # (B, N, E): flatten(2).transpose(1, 2)

    if not flatten:
        out = out.reshape(b_sz, gh, gw, e).transpose(0, 3, 1, 2)

    if scale:
        sup = super_embed_dim if super_embed_dim is not None else e_super
        out = out * (sup / e)

    # TODO(synk): optional Super_Norm (norm=True) post-LN/RMSNorm branch not
    # implemented here; the constructor default is norm=False.
    return out


def init_super_patch_embed_params(key, embed_dim, in_chans, patch_size):
    """Mirror nn.Conv2d default init: kaiming_uniform_(a=sqrt(5)) ->
    U(-1/sqrt(fan_in), 1/sqrt(fan_in)) for weight and bias,
    fan_in = in_chans * P * P."""
    kw, kb = jax.random.split(key)
    fan_in = in_chans * patch_size * patch_size
    bound = 1.0 / math.sqrt(fan_in)
    weight = jax.random.uniform(kw, (embed_dim, in_chans, patch_size, patch_size),
                                jnp.float32, -bound, bound)
    bias = jax.random.uniform(kb, (embed_dim,), jnp.float32, -bound, bound)
    return weight, bias


def _reference_patch_embed(x, weight, bias, patch_size):
    """Pure-JAX reference: F.conv2d(stride=patch, dynamic pad) + flatten/transpose."""
    ph = pw = patch_size
    b, c, h, w = x.shape
    pad_h = (-h) % ph
    pad_w = (-w) % pw
    x = jnp.pad(x, ((0, 0), (0, 0), (0, pad_h), (0, pad_w)))
    y = jax.lax.conv_general_dilated(
        x, weight, window_strides=(ph, pw), padding="VALID",
        dimension_numbers=("NCHW", "OIHW", "NCHW"))
    y = y + bias[None, :, None, None]
    b2, e, gh, gw = y.shape
    return y.reshape(b2, e, gh * gw).transpose(0, 2, 1)


if __name__ == "__main__":
    key = jax.random.PRNGKey(0)
    k_x1, k_x2, k_p = jax.random.split(key, 3)

    # Small shapes consistent with the module: batch=2, in_chans=3, 16x16 image,
    # patch_size=8, super embed_dim=32, sampled embed_dim=24.
    B, C, H, W, P, E_SUPER, E_SAMPLE = 2, 3, 16, 16, 8, 32, 24
    weight, bias = init_super_patch_embed_params(k_p, E_SUPER, C, P)

    # Case 1: divisible image, sampled (sliced) embed dim.
    x1 = jax.random.normal(k_x1, (B, C, H, W), jnp.float32)
    out1 = super_patch_embed(x1, weight, bias, patch_size=P,
                             sample_embed_dim=E_SAMPLE)
    out1 = jax.block_until_ready(out1)
    ref1 = _reference_patch_embed(x1, weight[:E_SAMPLE], bias[:E_SAMPLE], P)
    assert out1.shape == (B, (H // P) * (W // P), E_SAMPLE), out1.shape
    assert jnp.allclose(out1, ref1, atol=1e-4, rtol=1e-4)

    # Case 2: non-divisible image (exercises dynamic_img_pad), full embed dim.
    x2 = jax.random.normal(k_x2, (B, C, 15, 13), jnp.float32)
    out2 = super_patch_embed(x2, weight, bias, patch_size=P)
    out2 = jax.block_until_ready(out2)
    ref2 = _reference_patch_embed(x2, weight, bias, P)
    assert out2.shape == ref2.shape, (out2.shape, ref2.shape)
    assert jnp.allclose(out2, ref2, atol=1e-4, rtol=1e-4)

    print("KERNEL_OK")
</pallas_src>

<mosaic_0001>
module attributes {stable_mosaic.version = 11 : i64} {
  func.func @_patch_embed_gemm_kernel(%arg0: i32, %arg1: i32, %arg2: memref<8x192xf32, #tpu.memory_space<vmem>>, %arg3: memref<192x128xf32, #tpu.memory_space<vmem>>, %arg4: memref<1x128xf32, #tpu.memory_space<vmem>>, %arg5: memref<8x128xf32, #tpu.memory_space<vmem>>) attributes {dimension_semantics = [#tpu.dimension_semantics<parallel>, #tpu.dimension_semantics<parallel>], iteration_bounds = array<i64: 1, 1>, scalar_prefetch = 0 : i64, scratch_operands = 0 : i64, tpu.core_type = #tpu.core_type<tc>, window_params = [{transform_indices = @transform_0, window_bounds = array<i64: 8, 192>}, {transform_indices = @transform_1, window_bounds = array<i64: 192, 128>}, {transform_indices = @transform_2, window_bounds = array<i64: 1, 128>}, {transform_indices = @transform_3, window_bounds = array<i64: 8, 128>}]} {
    %c0 = arith.constant 0 : index
    %c0_0 = arith.constant 0 : index
    %0 = vector.load %arg2[%c0, %c0_0] : memref<8x192xf32, #tpu.memory_space<vmem>>, vector<8x192xf32>
    %c0_1 = arith.constant 0 : index
    %c0_2 = arith.constant 0 : index
    %1 = vector.load %arg3[%c0_1, %c0_2] : memref<192x128xf32, #tpu.memory_space<vmem>>, vector<192x128xf32>
    %cst = arith.constant dense<0.000000e+00> : vector<8x128xf32>
    %2 = tpu.matmul %0, %1, %cst {dimension_numbers = #tpu.dot_dimension_numbers<[1], [0], [0], [1], [0, 0, 1, 1], [], []>} : vector<8x192xf32>, vector<192x128xf32>, vector<8x128xf32> -> vector<8x128xf32>
    %c0_3 = arith.constant 0 : index
    %c0_4 = arith.constant 0 : index
    %3 = vector.load %arg4[%c0_3, %c0_4] : memref<1x128xf32, #tpu.memory_space<vmem>>, vector<1x128xf32>
    %4 = vector.broadcast %3 : vector<1x128xf32> to vector<8x128xf32>
    %5 = arith.addf %2, %4 : vector<8x128xf32>
    %c0_5 = arith.constant 0 : index
    %c0_6 = arith.constant 0 : index
    %6 = vector.load %arg5[%c0_5, %c0_6] : memref<8x128xf32, #tpu.memory_space<vmem>>, vector<8x128xf32>
    tpu.vector_store %arg5[%c0_5, %c0_6], %5 {strides = array<i32>} : memref<8x128xf32, #tpu.memory_space<vmem>>, vector<8x128xf32>,
    return
  }
  func.func @transform_0(%arg0: i32, %arg1: i32) -> (i32, i32) {
    %c0_i32 = arith.constant 0 : i32
    %c0_i32_0 = arith.constant 0 : i32
    return %arg0, %c0_i32 : i32, i32
  }
  func.func @transform_1(%arg0: i32, %arg1: i32) -> (i32, i32) {
    %c0_i32 = arith.constant 0 : i32
    %c0_i32_0 = arith.constant 0 : i32
    return %c0_i32, %arg1 : i32, i32
  }
  func.func @transform_2(%arg0: i32, %arg1: i32) -> (i32, i32) {
    %c0_i32 = arith.constant 0 : i32
    %c0_i32_0 = arith.constant 0 : i32
    return %c0_i32, %arg1 : i32, i32
  }
  func.func @transform_3(%arg0: i32, %arg1: i32) -> (i32, i32) {
    %c0_i32 = arith.constant 0 : i32
    return %arg0, %arg1 : i32, i32
  }
}

</mosaic_0001>

<llo_original>
// kernel: super_patch_embed.1
$region0: #{super_patch_embed.1}
  #allocation0 [shape = 'u32[]', space=smem, size = 0x4, offset = 0x4, fixed_abs, tag = 'smem constant byte address 0x4 - core index']
  #allocation1 [shape = 'u32[144,128]{1,0:T(1,128)}', space=vmem, size = 0x12000, scoped, tag = 'internal scratch']
  %s0 = inlined_call_operand.vmem [shape: f32[8,192], index: 0, kind: input, shape index: {}]
  %s1 = inlined_call_operand.vmem [shape: f32[192,128], index: 1, kind: input, shape index: {}]
  %s2 = inlined_call_operand.vmem [shape: f32[1,128], index: 2, kind: input, shape index: {}]
  %s3 = inlined_call_operand.hbm [shape: f32[8,128], index: 3, kind: output, shape index: {}]
  %s4 = sld [smem:[#allocation0]]
  $region22: #{super_patch_embed.1} parent=0
    _
  %s6 = ssub.s32 1, %s4
  %s7 = scalar_select 0, %s6, %s4
  $region1: #{super_patch_embed.1} parent=0
    #allocation2 [shape = 'u8[4096]{0}', space=vmem, size = 0x1000, scoped, tag = 'output window, operand 0, single buffered']
    #allocation3 [shape = 's32[1]{0}', space=sflag, size = 0x4, scoped, tag = 'scoped memory for super_patch_embed.1']
    %8 = vsyncpa [#allocation3], 0
    // Predicated region
    $region2: #{super_patch_embed.1} parent=1 // pred_check
      _
    $region3: #{super_patch_embed.1} parent=1 // pred_check_branch
      %10 = sbr.rel (0) target = $region5
    $region4: #{super_patch_embed.1} parent=1 // pred_region
      _
    $region5: #{super_patch_embed.1} parent=1 // pred_fallthru
      _
    // Predicated region
    $region6: #{super_patch_embed.1} parent=1 // pred_check
      _
    $region7: #{super_patch_embed.1} parent=1 // pred_check_branch
      %12 = sbr.rel (0) target = $region9
    $region8: #{super_patch_embed.1} parent=1 // pred_region
      _
    $region9: #{super_patch_embed.1} parent=1 // pred_fallthru
      _
    // Predicated region
    $region10: #{super_patch_embed.1} parent=1 // pred_check
      _
    $region11: #{super_patch_embed.1} parent=1 // pred_check_branch
      %14 = sbr.rel (0) target = $region13
    $region12: #{super_patch_embed.1} parent=1 // pred_region
      _
    $region13: #{super_patch_embed.1} parent=1 // pred_fallthru
      _
    %v15 = vld [vmem:[%s0] sm:$0xff]
    %v16 = vld [vmem:[%s0 + $0x8] sm:$0xff]
    %v17 = vld [vmem:[%s1] sm:$0xff]
    %v18 = vld [vmem:[%s1 + $0x8] sm:$0xff]
    %v19 = vld [vmem:[%s1 + $0x10] sm:$0xff]
    %v20 = vld [vmem:[%s1 + $0x18] sm:$0xff]
    %v21 = vld [vmem:[%s1 + $0x20] sm:$0xff]
    %v22 = vld [vmem:[%s1 + $0x28] sm:$0xff]
    %v23 = vld [vmem:[%s1 + $0x30] sm:$0xff]
    %v24 = vld [vmem:[%s1 + $0x38] sm:$0xff]
    %v25 = vld [vmem:[%s1 + $0x40] sm:$0xff]
    %v26 = vld [vmem:[%s1 + $0x48] sm:$0xff]
    %v27 = vld [vmem:[%s1 + $0x50] sm:$0xff]
    %v28 = vld [vmem:[%s1 + $0x58] sm:$0xff]
    %v29 = vld [vmem:[%s1 + $0x60] sm:$0xff]
    %v30 = vld [vmem:[%s1 + $0x68] sm:$0xff]
    %v31 = vld [vmem:[%s1 + $0x70] sm:$0xff]
    %v32 = vld [vmem:[%s1 + $0x78] sm:$0xff]
    %v33 = vld [vmem:[%s1 + $0x80] sm:$0xff]
    %v34 = vld [vmem:[%s1 + $0x88] sm:$0xff]
    %v35 = vld [vmem:[%s1 + $0x90] sm:$0xff]
    %v36 = vld [vmem:[%s1 + $0x98] sm:$0xff]
    %v37 = vld [vmem:[%s1 + $0xa0] sm:$0xff]
    %v38 = vld [vmem:[%s1 + $0xa8] sm:$0xff]
    %v39 = vld [vmem:[%s1 + $0xb0] sm:$0xff]
    %v40 = vld [vmem:[%s1 + $0xb8] sm:$0xff]
    %v41 = vld [vmem:[%s2] sm:$0x1]
    %v43 = vlaneseq
    %v44 = vshrl.u32 %v43, 7
    %v45 = vsub.s32 0, %v44
    %v46 = vrot.slane %v41, %v45
    %vm48 = vcmask 523264
    %v50 = vsel %vm48, %v16, 0
    %52 = vmatprep.subr.mxu0 0.0
    %53 = vmatpush1.msra.mxu0 %v17
    %54 = vmatprep.subr.mxu0 0.0
    %55 = vmatpush1.msra.mxu0 %v18
    %56 = vmatprep.subr.mxu0 0.0
    %57 = vmatpush1.msra.mxu0 %v19
    %58 = vmatprep.subr.mxu0 0.0
    %59 = vmatpush1.msra.mxu0 %v20
    %60 = vmatprep.subr.mxu0 0.0
    %61 = vmatpush1.msra.mxu0 %v21
    %62 = vmatprep.subr.mxu0 0.0
    %63 = vmatpush1.msra.mxu0 %v22
    %64 = vmatprep.subr.mxu0 0.0
    %65 = vmatpush1.msra.mxu0 %v23
    %66 = vmatprep.subr.mxu0 0.0
    %67 = vmatpush1.msra.mxu0 %v24
    %68 = vmatprep.subr.mxu0 0.0
    %69 = vmatpush1.msra.mxu0 %v25
    %70 = vmatprep.subr.mxu0 0.0
    %71 = vmatpush1.msra.mxu0 %v26
    %72 = vmatprep.subr.mxu0 0.0
    %73 = vmatpush1.msra.mxu0 %v27
    %74 = vmatprep.subr.mxu0 0.0
    %75 = vmatpush1.msra.mxu0 %v28
    %76 = vmatprep.subr.mxu0 0.0
    %77 = vmatpush1.msra.mxu0 %v29
    %78 = vmatprep.subr.mxu0 0.0
    %79 = vmatpush1.msra.mxu0 %v30
    %80 = vmatprep.subr.mxu0 0.0
    %81 = vmatpush1.msra.mxu0 %v31
    %82 = vmatprep.subr.mxu0 0.0
    %83 = vmatpush1.msra.mxu0 %v32
    %84 = vmatprep.subr.mxu0 0.0
    %85 = vmatpush1.msra.mxu0 %v33
    %86 = vmatprep.subr.mxu0 0.0
    %87 = vmatpush1.msra.mxu0 %v34
    %88 = vmatprep.subr.mxu0 0.0
    %89 = vmatpush1.msra.mxu0 %v35
    %90 = vmatprep.subr.mxu0 0.0
    %91 = vmatpush1.msra.mxu0 %v36
    %92 = vmatprep.subr.mxu0 0.0
    %93 = vmatpush1.msra.mxu0 %v37
    %94 = vmatprep.subr.mxu0 0.0
    %95 = vmatpush1.msra.mxu0 %v38
    %96 = vmatprep.subr.mxu0 0.0
    %97 = vmatpush1.msra.mxu0 %v39
    %98 = vmatprep.subr.mxu0 0.0
    %99 = vmatpush1.msra.mxu0 %v40
    %100 = vmatprep.subr.mxu0 0.0
    %101 = vmatpush1.msra.mxu0 0.0
    %102 = vmatprep.subr.mxu0 0.0
    %103 = vmatpush1.msra.mxu0 0.0
    %104 = vmatprep.subr.mxu0 0.0
    %105 = vmatpush1.msra.mxu0 0.0
    %106 = vmatprep.subr.mxu0 0.0
    %107 = vmatpush1.msra.mxu0 0.0
    %108 = vmatprep.subr.mxu0 0.0
    %109 = vmatpush1.msra.mxu0 0.0
    %110 = vmatprep.subr.mxu0 0.0
    %111 = vmatpush1.msra.mxu0 0.0
    %112 = vmatprep.subr.mxu0 0.0
    %113 = vmatpush1.msra.mxu0 0.0
    %114 = vmatprep.subr.mxu0 0.0
    %115 = vmatpush1.msra.mxu0 0.0
    %116 = vmatprep.mubr.f32.mxu0 %v50
    %117 = vmatmul.mubr.f32.gmra.mrb[0].mxu0 %v15
    %v118 = vpop.f32.mrb[0].mxu0
    %v119 = vadd.f32 %v46, %v118
    %v120 = vpop.f32.mrb[0].mxu0
    %121 = vdwg.mxu0
    %122 = vst [vmem:[#allocation2] sm:$0xff] %v119
    // Predicated region
    $region14: #{super_patch_embed.1} parent=1 // pred_check
      _
    $region15: #{super_patch_embed.1} parent=1 // pred_check_branch
      %124 = sbr.rel (0) target = $region17
    $region16: #{super_patch_embed.1} parent=1 // pred_region
      %s126 = ssub.s32 128, 128
      %127 = vsyncadd [#allocation3], %s126
      %s129 = sshll.u32 [#allocation2], 4
      %s130 = int_to_ptr.vmem [resolvable:$true] %s129
      %132 = dma.vmem_to_hbm [thread:$0]  %s130, 128, %s3, [#allocation3]
    $region17: #{super_patch_embed.1} parent=1 // pred_fallthru
      _
    // Predicated region
    $region18: #{super_patch_embed.1} parent=1 // pred_check
      _
    $region19: #{super_patch_embed.1} parent=1 // pred_check_branch
      %134 = sbr.rel (0) target = $region21
    $region20: #{super_patch_embed.1} parent=1 // pred_region
      %135 = dma.done [#allocation3], 128
    $region21: #{super_patch_embed.1} parent=1 // pred_fallthru
      _
    %136 = vsyncpa [#allocation3], 1

</llo_original>
